<compile_context>
chip_gen: v6e
topology: v6e:2x2x1
jax: 0.10.0
libtpu: 0.0.40
codegen_flags: <defaults>
</compile_context>

<pallas_src>
import functools

import jax
import jax.numpy as jnp
from jax import lax
from jax.experimental import pallas as pl
from jax.experimental.pallas import tpu as pltpu


def _lane_roll(x, shift):
    """Rotate lanes (last axis) by `shift` (jnp.roll semantics).

    Uses the XLU rotate (pltpu.roll, co-issues with MXU/VPU work) when the
    lane extent is a multiple of 128; otherwise falls back to jnp.roll
    (slice+concat), which is always safe to lower."""
    n = x.shape[-1]
    shift = shift % n
    if shift == 0:
        return x
    if n % 128 == 0:
        return pltpu.roll(x, shift, axis=x.ndim - 1)
    return jnp.roll(x, shift, axis=-1)


def fire_kernel(x_ref, wsq_ref, bsq_ref, w1_ref, b1_ref, w3_ref, b3_ref,
                out_ref, s_pad_ref, *, H, W, rows_per_chunk):
    """One grid step processes B images (channels on sublanes, pixels on
    lanes).  Per image: squeeze matmul -> expand1x1 matmul on s -> row-chunked
    im2col + expand3x3 matmul fed from a zero-row-padded VMEM scratch."""
    B = x_ref.shape[0]
    Csq = wsq_ref.shape[0]
    Ce1 = w1_ref.shape[0]
    HW = H * W
    cdt = w3_ref.dtype                       # MXU operand dtype
    R = rows_per_chunk
    n_chunks = H // R
    P_chunk = R * W                          # output pixels per chunk (lanes)
    L_band = (R + 2) * W                     # chunk rows + 1 halo row each side

    # Zero the one-row top/bottom padding of the scratch once per grid step;
    # it is never overwritten by image data.
    s_pad_ref[:, :W] = jnp.zeros((Csq, W), cdt)
    s_pad_ref[:, W + HW:] = jnp.zeros((Csq, W), cdt)

    # Column boundary masks for the 3x3 taps, built ONCE at shape (1, P_chunk)
    # (broadcast over Csq in jnp.where).  Row masks are unnecessary: the zero
    # pad rows of the scratch supply the dy boundary zeros.
    col = lax.broadcasted_iota(jnp.int32, (1, P_chunk), 1) % W
    m_left = col >= 1          # source column w-1 valid   (dx == 0 taps)
    m_right = col <= W - 2     # source column w+1 valid   (dx == 2 taps)

    for b in range(B):                                   # static image loop
        # ---- squeeze 1x1 conv + ReLU: (Csq, Cin) @ (Cin, HW) ---------------
        x = x_ref[b].astype(cdt)                         # in-kernel cast
        s = jnp.dot(wsq_ref[...], x, preferred_element_type=jnp.float32)
        s = jnp.maximum(s + bsq_ref[...], 0.0)           # fp32 epilogue
        s = s.astype(cdt)

        # ---- expand1x1 directly on s: (Ce1, Csq) @ (Csq, HW) ---------------
        e1 = jnp.dot(w1_ref[...], s, preferred_element_type=jnp.float32)
        e1 = jnp.maximum(e1 + b1_ref[...], 0.0)
        out_ref[b, :Ce1, :] = e1.astype(out_ref.dtype)   # lane-dense store

        # ---- stash s with one zero row of padding top & bottom -------------
        s_pad_ref[:, W:W + HW] = s

        # ---- expand3x3 over row chunks --------------------------------------
        for c in range(n_chunks):                        # static chunk loop
            start = c * P_chunk
            band = s_pad_ref[:, start:start + L_band]    # (Csq, (R+2)*W)
            taps = []
            for dy in range(3):
                for dx in range(3):
                    # output band index i needs band[i + sh], sh = dy*W+dx-1
                    sh = dy * W + dx - 1
                    t = _lane_roll(band, -sh)[:, :P_chunk]
                    if dx == 0:
                        t = jnp.where(m_left, t, jnp.zeros_like(t))
                    elif dx == 2:
                        t = jnp.where(m_right, t, jnp.zeros_like(t))
                    taps.append(t)
            patches = jnp.concatenate(taps, axis=0)      # (9*Csq, P_chunk)
            e3 = jnp.dot(w3_ref[...], patches,
                         preferred_element_type=jnp.float32)
            e3 = jnp.maximum(e3 + b3_ref[...], 0.0)      # fp32 epilogue
            out_ref[b, Ce1:, start:start + P_chunk] = e3.astype(out_ref.dtype)


def _rows_per_chunk(H, W, Csq, itemsize, *, patch_budget=128 * 1024):
    """Largest row-chunk R dividing H whose (9*Csq, R*W) im2col tile stays
    within `patch_budget` bytes (keeps the RHS near the vreg budget instead of
    spilling); prefer R*W % 128 == 0 so chunk slices/stores stay lane-aligned."""
    best, best_aligned = 1, None
    for r in range(1, H + 1):
        if H % r:
            continue
        if 9 * Csq * r * W * itemsize <= patch_budget:
            best = r
            if (r * W) % 128 == 0:
                best_aligned = r
    return best_aligned if best_aligned is not None else best


def _images_per_step(n, bytes_per_image, *, vmem_budget=12 * 2**20,
                     target=8, min_steps=4):
    """Images per grid step: amortize ~0.35us/step pipeline overhead, but
    (a) keep >= min_steps grid steps (>= 2 per v7x TensorCore so the software
        pipeline stays primed on both cores), and
    (b) keep double-buffered per-step activation I/O inside a conservative
        VMEM budget (safe under the 16 MiB v5e default scoped VMEM)."""
    cap = max(1, vmem_budget // max(1, 2 * bytes_per_image))
    b = max(1, min(target, n, cap))
    while n % b:
        b -= 1
    while b > 1 and n // b < min(min_steps, n):
        b -= 1
        while n % b:
            b -= 1
    return max(1, b)


def fire_forward(x_nchw, wsq_pt, bsq, w1_pt, b1, w3_pt, b3, *,
                 compute_dtype=None, images_per_step=None,
                 rows_per_chunk=None, vmem_limit_bytes=None):
    """Fire forward.  x_nchw: (N, Cin, H, W); weights in PyTorch Conv2d
    (O, I, kh, kw) layout; biases (O,).  Returns (N, Ce1+Ce3, H, W).

    compute_dtype: MXU operand dtype (jnp.bfloat16 recommended on v6e/v7x);
    accumulation / bias / ReLU always stay fp32."""
    N, Cin, H, W = x_nchw.shape
    Csq = wsq_pt.shape[0]
    Ce1 = w1_pt.shape[0]
    Ce3 = w3_pt.shape[0]
    Cout = Ce1 + Ce3
    HW = H * W
    cdt = jnp.dtype(x_nchw.dtype if compute_dtype is None else compute_dtype)

    # One-time host-side weight prep (kernel layouts).
    wsq = wsq_pt[:, :, 0, 0].astype(cdt)                        # (Csq, Cin)
    w1 = w1_pt[:, :, 0, 0].astype(cdt)                          # (Ce1, Csq)
    # expand3x3 weight, tap-major / channel-minor columns to match the
    # im2col row order (tap index = dy*3+dx, channel within tap).
    w3 = jnp.transpose(w3_pt, (0, 2, 3, 1)).reshape(Ce3, 9 * Csq).astype(cdt)
    bsq2 = bsq.reshape(Csq, 1).astype(jnp.float32)
    b1_2 = b1.reshape(Ce1, 1).astype(jnp.float32)
    b3_2 = b3.reshape(Ce3, 1).astype(jnp.float32)

    # Free row-major reshape NCHW -> (N, Cin, H*W); NO host-side dtype cast
    # (cast to compute_dtype happens inside the kernel, hidden under MXU work).
    x3 = x_nchw.reshape(N, Cin, HW)

    if rows_per_chunk is None:
        rows_per_chunk = _rows_per_chunk(H, W, Csq, cdt.itemsize)
    assert H % rows_per_chunk == 0, (H, rows_per_chunk)

    bytes_per_image = HW * (Cin + Cout) * x_nchw.dtype.itemsize
    B = (images_per_step if images_per_step is not None
         else _images_per_step(N, bytes_per_image))
    assert N % B == 0, (N, B)

    kern = functools.partial(fire_kernel, H=H, W=W,
                             rows_per_chunk=rows_per_chunk)
    out3 = pl.pallas_call(
        kern,
        out_shape=jax.ShapeDtypeStruct((N, Cout, HW), x_nchw.dtype),
        grid_spec=pltpu.PrefetchScalarGridSpec(
            num_scalar_prefetch=0,
            grid=(N // B,),
            in_specs=[
                pl.BlockSpec((B, Cin, HW), lambda n: (n, 0, 0)),
                pl.BlockSpec((Csq, Cin), lambda n: (0, 0)),
                pl.BlockSpec((Csq, 1), lambda n: (0, 0)),
                pl.BlockSpec((Ce1, Csq), lambda n: (0, 0)),
                pl.BlockSpec((Ce1, 1), lambda n: (0, 0)),
                pl.BlockSpec((Ce3, 9 * Csq), lambda n: (0, 0)),
                pl.BlockSpec((Ce3, 1), lambda n: (0, 0)),
            ],
            out_specs=pl.BlockSpec((B, Cout, HW), lambda n: (n, 0, 0)),
            # Squeeze activation with one zero row of top/bottom padding.
            scratch_shapes=[pltpu.VMEM((Csq, (H + 2) * W), cdt)],
        ),
        compiler_params=pltpu.CompilerParams(
            dimension_semantics=("parallel",),
            vmem_limit_bytes=vmem_limit_bytes),
    )(x3, wsq, bsq2, w1, b1_2, w3, b3_2)

    return out3.reshape(N, Cout, H, W)    # free reshape back to NCHW


def fire_reference(x, wsq_oihw, bsq, w1_oihw, b1, w3_oihw, b3):
    """Pure-JAX reference with PyTorch-layout (OIHW) weights, NCHW data."""
    def conv(x, w, pad):
        return lax.conv_general_dilated(
            x, w, window_strides=(1, 1), padding=pad,
            dimension_numbers=("NCHW", "OIHW", "NCHW"))
    s = jax.nn.relu(conv(x, wsq_oihw, "VALID") + bsq[None, :, None, None])
    e1 = jax.nn.relu(conv(s, w1_oihw, "VALID") + b1[None, :, None, None])
    e3 = jax.nn.relu(conv(s, w3_oihw, ((1, 1), (1, 1))) + b3[None, :, None, None])
    return jnp.concatenate([e1, e3], axis=1)


if __name__ == "__main__":
    # Fire(in_planes=4, squeeze_planes=8, expand1x1_planes=16, expand3x3_planes=16)
    N, Cin, H, W = 2, 4, 16, 16
    Csq, Ce1, Ce3 = 8, 16, 16

    key = jax.random.PRNGKey(0)
    ks = jax.random.split(key, 7)

    # Deterministic synthetic parameters in PyTorch Conv2d layout (O, I, kh, kw).
    wsq_pt = 0.2 * jax.random.normal(ks[0], (Csq, Cin, 1, 1), jnp.float32)
    bsq = 0.1 * jax.random.normal(ks[1], (Csq,), jnp.float32)
    w1_pt = 0.2 * jax.random.normal(ks[2], (Ce1, Csq, 1, 1), jnp.float32)
    b1 = 0.1 * jax.random.normal(ks[3], (Ce1,), jnp.float32)
    w3_pt = 0.2 * jax.random.normal(ks[4], (Ce3, Csq, 3, 3), jnp.float32)
    b3 = 0.1 * jax.random.normal(ks[5], (Ce3,), jnp.float32)
    x = jax.random.normal(ks[6], (N, Cin, H, W), jnp.float32)

    ref = jax.block_until_ready(
        fire_reference(x, wsq_pt, bsq, w1_pt, b1, w3_pt, b3))

    # fp32 MXU operands, default (single-chunk) im2col path.
    out = jax.block_until_ready(
        fire_forward(x, wsq_pt, bsq, w1_pt, b1, w3_pt, b3))
    assert out.shape == (N, Ce1 + Ce3, H, W), out.shape
    assert jnp.allclose(out, ref, atol=1e-4, rtol=1e-4), "fp32 mismatch"

    # Exercise the row-chunked im2col path (2 chunks per image, interior halo
    # rows come from the VMEM scratch, edge halos from the zero pad rows).
    out_chunked = jax.block_until_ready(
        fire_forward(x, wsq_pt, bsq, w1_pt, b1, w3_pt, b3,
                     rows_per_chunk=8, images_per_step=1))
    assert jnp.allclose(out_chunked, ref, atol=1e-4, rtol=1e-4), \
        "fp32 chunked mismatch"

    # bf16 MXU operands (v6e/v7x fast path); fp32 accumulation/epilogue.
    # (s is rounded to bf16 before the expand matmuls, hence the 5e-2 tol.)
    out_bf16 = jax.block_until_ready(
        fire_forward(x, wsq_pt, bsq, w1_pt, b1, w3_pt, b3,
                     compute_dtype=jnp.bfloat16))
    assert jnp.allclose(out_bf16, ref, atol=5e-2, rtol=5e-2), "bf16 mismatch"

    print("KERNEL_OK")
</pallas_src>

<mosaic_0001>
module attributes {stable_mosaic.version = 11 : i64} {
  func.func @fire_kernel(%arg0: i32, %arg1: memref<1x4x256xf32, #tpu.memory_space<vmem>>, %arg2: memref<8x4xf32, #tpu.memory_space<vmem>>, %arg3: memref<8x1xf32, #tpu.memory_space<vmem>>, %arg4: memref<16x8xf32, #tpu.memory_space<vmem>>, %arg5: memref<16x1xf32, #tpu.memory_space<vmem>>, %arg6: memref<16x72xf32, #tpu.memory_space<vmem>>, %arg7: memref<16x1xf32, #tpu.memory_space<vmem>>, %arg8: memref<1x32x256xf32, #tpu.memory_space<vmem>>, %arg9: memref<8x288xf32, #tpu.memory_space<vmem>>) attributes {dimension_semantics = [#tpu.dimension_semantics<parallel>], iteration_bounds = array<i64: 2>, scalar_prefetch = 0 : i64, scratch_operands = 1 : i64, tpu.core_type = #tpu.core_type<tc>, window_params = [{transform_indices = @transform_0, window_bounds = array<i64: 1, 4, 256>}, {pipeline_mode = #tpu.pipeline_mode<synchronous>, transform_indices = @transform_1, window_bounds = array<i64: 8, 4>}, {pipeline_mode = #tpu.pipeline_mode<synchronous>, transform_indices = @transform_2, window_bounds = array<i64: 8, 1>}, {pipeline_mode = #tpu.pipeline_mode<synchronous>, transform_indices = @transform_3, window_bounds = array<i64: 16, 8>}, {pipeline_mode = #tpu.pipeline_mode<synchronous>, transform_indices = @transform_4, window_bounds = array<i64: 16, 1>}, {pipeline_mode = #tpu.pipeline_mode<synchronous>, transform_indices = @transform_5, window_bounds = array<i64: 16, 72>}, {pipeline_mode = #tpu.pipeline_mode<synchronous>, transform_indices = @transform_6, window_bounds = array<i64: 16, 1>}, {transform_indices = @transform_7, window_bounds = array<i64: 1, 32, 256>}]} {
    %cst = arith.constant 0.000000e+00 : f32
    %0 = vector.broadcast %cst : f32 to vector<8x16xf32>
    %c0 = arith.constant 0 : index
    %c0_0 = arith.constant 0 : index
    %1 = vector.load %arg9[%c0, %c0_0] : memref<8x288xf32, #tpu.memory_space<vmem>>, vector<8x16xf32>
    tpu.vector_store %arg9[%c0, %c0_0], %0 {strides = array<i32>} : memref<8x288xf32, #tpu.memory_space<vmem>>, vector<8x16xf32>,
    %cst_1 = arith.constant 0.000000e+00 : f32
    %2 = vector.broadcast %cst_1 : f32 to vector<8x16xf32>
    %c0_2 = arith.constant 0 : index
    %c272 = arith.constant 272 : index
    %3 = vector.load %arg9[%c0_2, %c272] : memref<8x288xf32, #tpu.memory_space<vmem>>, vector<8x16xf32>
    tpu.vector_store %arg9[%c0_2, %c272], %2 {strides = array<i32>} : memref<8x288xf32, #tpu.memory_space<vmem>>, vector<8x16xf32>,
    %4 = tpu.iota {dimensions = array<i32: 1>} : vector<1x256xi32>
    %c16_i32 = arith.constant 16 : i32
    %c0_i32 = arith.constant 0 : i32
    %5 = arith.cmpi eq, %c16_i32, %c0_i32 : i32
    %c1_i32 = arith.constant 1 : i32
    %6 = arith.select %5, %c1_i32, %c16_i32 : i32
    %7 = vector.broadcast %6 : i32 to vector<1x256xi32>
    %8 = arith.remsi %4, %7 : vector<1x256xi32>
    %c0_i32_3 = arith.constant 0 : i32
    %9 = vector.broadcast %c0_i32_3 : i32 to vector<1x256xi32>
    %10 = arith.cmpi ne, %8, %9 : vector<1x256xi32>
    %c0_i32_4 = arith.constant 0 : i32
    %11 = vector.broadcast %c0_i32_4 : i32 to vector<1x256xi32>
    %12 = arith.cmpi slt, %8, %11 : vector<1x256xi32>
    %c0_i32_5 = arith.constant 0 : i32
    %13 = arith.cmpi slt, %6, %c0_i32_5 : i32
    %14 = vector.broadcast %13 : i1 to vector<1x256xi1>
    %15 = vector.broadcast %14 : vector<1x256xi1> to vector<1x256xi1>
    %16 = arith.xori %12, %15 : vector<1x256xi1>
    %17 = arith.andi %16, %10 : vector<1x256xi1>
    %18 = vector.broadcast %6 : i32 to vector<1x256xi32>
    %19 = arith.addi %8, %18 : vector<1x256xi32>
    %20 = arith.select %17, %19, %8 : vector<1x256xi1>, vector<1x256xi32>
    %c1_i32_6 = arith.constant 1 : i32
    %21 = vector.broadcast %c1_i32_6 : i32 to vector<1x256xi32>
    %22 = arith.cmpi sge, %20, %21 : vector<1x256xi32>
    %c14_i32 = arith.constant 14 : i32
    %23 = vector.broadcast %c14_i32 : i32 to vector<1x256xi32>
    %24 = arith.cmpi sle, %20, %23 : vector<1x256xi32>
    %c0_7 = arith.constant 0 : index
    %c0_8 = arith.constant 0 : index
    %c0_9 = arith.constant 0 : index
    %25 = vector.load %arg1[%c0_7, %c0_8, %c0_9] : memref<1x4x256xf32, #tpu.memory_space<vmem>>, vector<1x4x256xf32>
    %26 = vector.shape_cast %25 : vector<1x4x256xf32> to vector<4x256xf32>
    %c0_10 = arith.constant 0 : index
    %c0_11 = arith.constant 0 : index
    %27 = vector.load %arg2[%c0_10, %c0_11] : memref<8x4xf32, #tpu.memory_space<vmem>>, vector<8x4xf32>
    %cst_12 = arith.constant dense<0.000000e+00> : vector<8x256xf32>
    %28 = tpu.matmul %27, %26, %cst_12 {dimension_numbers = #tpu.dot_dimension_numbers<[1], [0], [0], [1], [0, 0, 1, 1], [], []>} : vector<8x4xf32>, vector<4x256xf32>, vector<8x256xf32> -> vector<8x256xf32>
    %c0_13 = arith.constant 0 : index
    %c0_14 = arith.constant 0 : index
    %29 = vector.load %arg3[%c0_13, %c0_14] : memref<8x1xf32, #tpu.memory_space<vmem>>, vector<8x1xf32>
    %30 = vector.broadcast %29 : vector<8x1xf32> to vector<8x256xf32>
    %31 = arith.addf %28, %30 : vector<8x256xf32>
    %cst_15 = arith.constant 0.000000e+00 : f32
    %32 = vector.broadcast %cst_15 : f32 to vector<8x256xf32>
    %33 = arith.maximumf %31, %32 : vector<8x256xf32>
    %c0_16 = arith.constant 0 : index
    %c0_17 = arith.constant 0 : index
    %34 = vector.load %arg4[%c0_16, %c0_17] : memref<16x8xf32, #tpu.memory_space<vmem>>, vector<16x8xf32>
    %cst_18 = arith.constant dense<0.000000e+00> : vector<16x256xf32>
    %35 = tpu.matmul %34, %33, %cst_18 {dimension_numbers = #tpu.dot_dimension_numbers<[1], [0], [0], [1], [0, 0, 1, 1], [], []>} : vector<16x8xf32>, vector<8x256xf32>, vector<16x256xf32> -> vector<16x256xf32>
    %c0_19 = arith.constant 0 : index
    %c0_20 = arith.constant 0 : index
    %36 = vector.load %arg5[%c0_19, %c0_20] : memref<16x1xf32, #tpu.memory_space<vmem>>, vector<16x1xf32>
    %37 = vector.broadcast %36 : vector<16x1xf32> to vector<16x256xf32>
    %38 = arith.addf %35, %37 : vector<16x256xf32>
    %cst_21 = arith.constant 0.000000e+00 : f32
    %39 = vector.broadcast %cst_21 : f32 to vector<16x256xf32>
    %40 = arith.maximumf %38, %39 : vector<16x256xf32>
    %c0_22 = arith.constant 0 : index
    %c0_23 = arith.constant 0 : index
    %c0_24 = arith.constant 0 : index
    %41 = vector.load %arg8[%c0_22, %c0_23, %c0_24] : memref<1x32x256xf32, #tpu.memory_space<vmem>>, vector<1x16x256xf32>
    %42 = vector.shape_cast %41 : vector<1x16x256xf32> to vector<16x256xf32>
    %43 = vector.shape_cast %40 : vector<16x256xf32> to vector<1x16x256xf32>
    tpu.vector_store %arg8[%c0_22, %c0_23, %c0_24], %43 {strides = array<i32>} : memref<1x32x256xf32, #tpu.memory_space<vmem>>, vector<1x16x256xf32>,
    %c0_25 = arith.constant 0 : index
    %c16 = arith.constant 16 : index
    %44 = vector.load %arg9[%c0_25, %c16] : memref<8x288xf32, #tpu.memory_space<vmem>>, vector<8x256xf32>
    tpu.vector_store %arg9[%c0_25, %c16], %33 {strides = array<i32>} : memref<8x288xf32, #tpu.memory_space<vmem>>, vector<8x256xf32>,
    %c0_26 = arith.constant 0 : index
    %c0_27 = arith.constant 0 : index
    %45 = vector.load %arg9[%c0_26, %c0_27] : memref<8x288xf32, #tpu.memory_space<vmem>>, vector<8x288xf32>
    %46 = vector.extract_strided_slice %45 {offsets = [0, 287], sizes = [8, 1], strides = [1, 1]} : vector<8x288xf32> to vector<8x1xf32>
    %47 = vector.extract_strided_slice %45 {offsets = [0, 0], sizes = [8, 287], strides = [1, 1]} : vector<8x288xf32> to vector<8x287xf32>
    %48 = tpu.concatenate %46, %47 in 1 : vector<8x1xf32>, vector<8x287xf32> -> vector<8x288xf32>
    %49 = vector.extract_strided_slice %48 {offsets = [0, 0], sizes = [8, 256], strides = [1, 1]} : vector<8x288xf32> to vector<8x256xf32>
    %cst_28 = arith.constant 0.000000e+00 : f32
    %50 = vector.broadcast %cst_28 : f32 to vector<8x256xf32>
    %51 = vector.shape_cast %22 : vector<1x256xi1> to vector<1x256xi1>
    %52 = vector.broadcast %51 : vector<1x256xi1> to vector<8x256xi1>
    %53 = arith.select %52, %49, %50 : vector<8x256xi1>, vector<8x256xf32>
    %54 = vector.extract_strided_slice %45 {offsets = [0, 0], sizes = [8, 256], strides = [1, 1]} : vector<8x288xf32> to vector<8x256xf32>
    %55 = vector.extract_strided_slice %45 {offsets = [0, 1], sizes = [8, 287], strides = [1, 1]} : vector<8x288xf32> to vector<8x287xf32>
    %56 = vector.extract_strided_slice %45 {offsets = [0, 0], sizes = [8, 1], strides = [1, 1]} : vector<8x288xf32> to vector<8x1xf32>
    %57 = tpu.concatenate %55, %56 in 1 : vector<8x287xf32>, vector<8x1xf32> -> vector<8x288xf32>
    %58 = vector.extract_strided_slice %57 {offsets = [0, 0], sizes = [8, 256], strides = [1, 1]} : vector<8x288xf32> to vector<8x256xf32>
    %cst_29 = arith.constant 0.000000e+00 : f32
    %59 = vector.broadcast %cst_29 : f32 to vector<8x256xf32>
    %60 = vector.shape_cast %24 : vector<1x256xi1> to vector<1x256xi1>
    %61 = vector.broadcast %60 : vector<1x256xi1> to vector<8x256xi1>
    %62 = arith.select %61, %58, %59 : vector<8x256xi1>, vector<8x256xf32>
    %63 = vector.extract_strided_slice %45 {offsets = [0, 15], sizes = [8, 273], strides = [1, 1]} : vector<8x288xf32> to vector<8x273xf32>
    %64 = vector.extract_strided_slice %45 {offsets = [0, 0], sizes = [8, 15], strides = [1, 1]} : vector<8x288xf32> to vector<8x15xf32>
    %65 = tpu.concatenate %63, %64 in 1 : vector<8x273xf32>, vector<8x15xf32> -> vector<8x288xf32>
    %66 = vector.extract_strided_slice %65 {offsets = [0, 0], sizes = [8, 256], strides = [1, 1]} : vector<8x288xf32> to vector<8x256xf32>
    %cst_30 = arith.constant 0.000000e+00 : f32
    %67 = vector.broadcast %cst_30 : f32 to vector<8x256xf32>
    %68 = vector.shape_cast %22 : vector<1x256xi1> to vector<1x256xi1>
    %69 = vector.broadcast %68 : vector<1x256xi1> to vector<8x256xi1>
    %70 = arith.select %69, %66, %67 : vector<8x256xi1>, vector<8x256xf32>
    %71 = vector.extract_strided_slice %45 {offsets = [0, 16], sizes = [8, 272], strides = [1, 1]} : vector<8x288xf32> to vector<8x272xf32>
    %72 = vector.extract_strided_slice %45 {offsets = [0, 0], sizes = [8, 16], strides = [1, 1]} : vector<8x288xf32> to vector<8x16xf32>
    %73 = tpu.concatenate %71, %72 in 1 : vector<8x272xf32>, vector<8x16xf32> -> vector<8x288xf32>
    %74 = vector.extract_strided_slice %73 {offsets = [0, 0], sizes = [8, 256], strides = [1, 1]} : vector<8x288xf32> to vector<8x256xf32>
    %75 = vector.extract_strided_slice %45 {offsets = [0, 17], sizes = [8, 271], strides = [1, 1]} : vector<8x288xf32> to vector<8x271xf32>
    %76 = vector.extract_strided_slice %45 {offsets = [0, 0], sizes = [8, 17], strides = [1, 1]} : vector<8x288xf32> to vector<8x17xf32>
    %77 = tpu.concatenate %75, %76 in 1 : vector<8x271xf32>, vector<8x17xf32> -> vector<8x288xf32>
    %78 = vector.extract_strided_slice %77 {offsets = [0, 0], sizes = [8, 256], strides = [1, 1]} : vector<8x288xf32> to vector<8x256xf32>
    %cst_31 = arith.constant 0.000000e+00 : f32
    %79 = vector.broadcast %cst_31 : f32 to vector<8x256xf32>
    %80 = vector.shape_cast %24 : vector<1x256xi1> to vector<1x256xi1>
    %81 = vector.broadcast %80 : vector<1x256xi1> to vector<8x256xi1>
    %82 = arith.select %81, %78, %79 : vector<8x256xi1>, vector<8x256xf32>
    %83 = vector.extract_strided_slice %45 {offsets = [0, 31], sizes = [8, 257], strides = [1, 1]} : vector<8x288xf32> to vector<8x257xf32>
    %84 = vector.extract_strided_slice %45 {offsets = [0, 0], sizes = [8, 31], strides = [1, 1]} : vector<8x288xf32> to vector<8x31xf32>
    %85 = tpu.concatenate %83, %84 in 1 : vector<8x257xf32>, vector<8x31xf32> -> vector<8x288xf32>
    %86 = vector.extract_strided_slice %85 {offsets = [0, 0], sizes = [8, 256], strides = [1, 1]} : vector<8x288xf32> to vector<8x256xf32>
    %cst_32 = arith.constant 0.000000e+00 : f32
    %87 = vector.broadcast %cst_32 : f32 to vector<8x256xf32>
    %88 = vector.shape_cast %22 : vector<1x256xi1> to vector<1x256xi1>
    %89 = vector.broadcast %88 : vector<1x256xi1> to vector<8x256xi1>
    %90 = arith.select %89, %86, %87 : vector<8x256xi1>, vector<8x256xf32>
    %91 = vector.extract_strided_slice %45 {offsets = [0, 32], sizes = [8, 256], strides = [1, 1]} : vector<8x288xf32> to vector<8x256xf32>
    %92 = vector.extract_strided_slice %45 {offsets = [0, 0], sizes = [8, 32], strides = [1, 1]} : vector<8x288xf32> to vector<8x32xf32>
    %93 = tpu.concatenate %91, %92 in 1 : vector<8x256xf32>, vector<8x32xf32> -> vector<8x288xf32>
    %94 = vector.extract_strided_slice %93 {offsets = [0, 0], sizes = [8, 256], strides = [1, 1]} : vector<8x288xf32> to vector<8x256xf32>
    %95 = vector.extract_strided_slice %45 {offsets = [0, 33], sizes = [8, 255], strides = [1, 1]} : vector<8x288xf32> to vector<8x255xf32>
    %96 = vector.extract_strided_slice %45 {offsets = [0, 0], sizes = [8, 33], strides = [1, 1]} : vector<8x288xf32> to vector<8x33xf32>
    %97 = tpu.concatenate %95, %96 in 1 : vector<8x255xf32>, vector<8x33xf32> -> vector<8x288xf32>
    %98 = vector.extract_strided_slice %97 {offsets = [0, 0], sizes = [8, 256], strides = [1, 1]} : vector<8x288xf32> to vector<8x256xf32>
    %cst_33 = arith.constant 0.000000e+00 : f32
    %99 = vector.broadcast %cst_33 : f32 to vector<8x256xf32>
    %100 = vector.shape_cast %24 : vector<1x256xi1> to vector<1x256xi1>
    %101 = vector.broadcast %100 : vector<1x256xi1> to vector<8x256xi1>
    %102 = arith.select %101, %98, %99 : vector<8x256xi1>, vector<8x256xf32>
    %103 = tpu.concatenate %53, %54, %62, %70, %74, %82, %90, %94, %102 in 0 : vector<8x256xf32>, vector<8x256xf32>, vector<8x256xf32>, vector<8x256xf32>, vector<8x256xf32>, vector<8x256xf32>, vector<8x256xf32>, vector<8x256xf32>, vector<8x256xf32> -> vector<72x256xf32>
    %c0_34 = arith.constant 0 : index
    %c0_35 = arith.constant 0 : index
    %104 = vector.load %arg6[%c0_34, %c0_35] : memref<16x72xf32, #tpu.memory_space<vmem>>, vector<16x72xf32>
    %cst_36 = arith.constant dense<0.000000e+00> : vector<16x256xf32>
    %105 = tpu.matmul %104, %103, %cst_36 {dimension_numbers = #tpu.dot_dimension_numbers<[1], [0], [0], [1], [0, 0, 1, 1], [], []>} : vector<16x72xf32>, vector<72x256xf32>, vector<16x256xf32> -> vector<16x256xf32>
    %c0_37 = arith.constant 0 : index
    %c0_38 = arith.constant 0 : index
    %106 = vector.load %arg7[%c0_37, %c0_38] : memref<16x1xf32, #tpu.memory_space<vmem>>, vector<16x1xf32>
    %107 = vector.broadcast %106 : vector<16x1xf32> to vector<16x256xf32>
    %108 = arith.addf %105, %107 : vector<16x256xf32>
    %cst_39 = arith.constant 0.000000e+00 : f32
    %109 = vector.broadcast %cst_39 : f32 to vector<16x256xf32>
    %110 = arith.maximumf %108, %109 : vector<16x256xf32>
    %c0_40 = arith.constant 0 : index
    %c16_41 = arith.constant 16 : index
    %c0_42 = arith.constant 0 : index
    %111 = vector.load %arg8[%c0_40, %c16_41, %c0_42] : memref<1x32x256xf32, #tpu.memory_space<vmem>>, vector<1x16x256xf32>
    %112 = vector.shape_cast %111 : vector<1x16x256xf32> to vector<16x256xf32>
    %113 = vector.shape_cast %110 : vector<16x256xf32> to vector<1x16x256xf32>
    tpu.vector_store %arg8[%c0_40, %c16_41, %c0_42], %113 {strides = array<i32>} : memref<1x32x256xf32, #tpu.memory_space<vmem>>, vector<1x16x256xf32>,
    return
  }
  func.func @transform_0(%arg0: i32) -> (i32, i32, i32) {
    %c0_i32 = arith.constant 0 : i32
    %c0_i32_0 = arith.constant 0 : i32
    %c0_i32_1 = arith.constant 0 : i32
    return %arg0, %c0_i32, %c0_i32_0 : i32, i32, i32
  }
  func.func @transform_1(%arg0: i32) -> (i32, i32) {
    %c0_i32 = arith.constant 0 : i32
    %c0_i32_0 = arith.constant 0 : i32
    %c0_i32_1 = arith.constant 0 : i32
    return %c0_i32, %c0_i32_0 : i32, i32
  }
  func.func @transform_2(%arg0: i32) -> (i32, i32) {
    %c0_i32 = arith.constant 0 : i32
    %c0_i32_0 = arith.constant 0 : i32
    %c0_i32_1 = arith.constant 0 : i32
    return %c0_i32, %c0_i32_0 : i32, i32
  }
  func.func @transform_3(%arg0: i32) -> (i32, i32) {
    %c0_i32 = arith.constant 0 : i32
    %c0_i32_0 = arith.constant 0 : i32
    %c0_i32_1 = arith.constant 0 : i32
    return %c0_i32, %c0_i32_0 : i32, i32
  }
  func.func @transform_4(%arg0: i32) -> (i32, i32) {
    %c0_i32 = arith.constant 0 : i32
    %c0_i32_0 = arith.constant 0 : i32
    %c0_i32_1 = arith.constant 0 : i32
    return %c0_i32, %c0_i32_0 : i32, i32
  }
  func.func @transform_5(%arg0: i32) -> (i32, i32) {
    %c0_i32 = arith.constant 0 : i32
    %c0_i32_0 = arith.constant 0 : i32
    %c0_i32_1 = arith.constant 0 : i32
    return %c0_i32, %c0_i32_0 : i32, i32
  }
  func.func @transform_6(%arg0: i32) -> (i32, i32) {
    %c0_i32 = arith.constant 0 : i32
    %c0_i32_0 = arith.constant 0 : i32
    %c0_i32_1 = arith.constant 0 : i32
    return %c0_i32, %c0_i32_0 : i32, i32
  }
  func.func @transform_7(%arg0: i32) -> (i32, i32, i32) {
    %c0_i32 = arith.constant 0 : i32
    %c0_i32_0 = arith.constant 0 : i32
    %c0_i32_1 = arith.constant 0 : i32
    return %arg0, %c0_i32, %c0_i32_0 : i32, i32, i32
  }
}

</mosaic_0001>

<llo_original>
// kernel: tpu_custom_call.1
$region0: #{tpu_custom_call.1}
  #allocation0 [shape = 'u32[]', space=smem, size = 0x4, offset = 0x4, fixed_abs, tag = 'smem constant byte address 0x4 - core index']
  #allocation1 [shape = 'u32[144,128]{1,0:T(1,128)}', space=vmem, size = 0x12000, scoped, tag = 'internal scratch']
  #allocation2 [shape = 'f32[8,288]{1,0:T(8,128)}', space=vmem, size = 0x3000, scoped, tag = 'scratch operand']
  %s0 = inlined_call_operand.vmem [shape: f32[2,4,256], index: 0, kind: input, shape index: {}]
  %s1 = inlined_call_operand.vmem [shape: f32[8,4], index: 1, kind: input, shape index: {}]
  %s2 = inlined_call_operand.vmem [shape: f32[8,1], index: 2, kind: input, shape index: {}]
  %s3 = inlined_call_operand.vmem [shape: f32[16,8], index: 3, kind: input, shape index: {}]
  %s4 = inlined_call_operand.vmem [shape: f32[16,1], index: 4, kind: input, shape index: {}]
  %s5 = inlined_call_operand.vmem [shape: f32[16,72], index: 5, kind: input, shape index: {}]
  %s6 = inlined_call_operand.vmem [shape: f32[16,1], index: 6, kind: input, shape index: {}]
  %s7 = inlined_call_operand.hbm [shape: f32[2,32,256], index: 7, kind: output, shape index: {}]
  %s8 = sld [smem:[#allocation0]]
  $region61: #{tpu_custom_call.1} parent=0
    _
  %s10 = ssub.s32 1, %s8
  %s11 = scalar_select 0, %s10, %s8
  $region1: #{tpu_custom_call.1} parent=0
    #allocation3 [shape = 'u8[65536]{0}', space=vmem, size = 0x10000, scoped, tag = 'output window, operand 0']
    #allocation4 [shape = 's32[2]{0}', space=sflag, size = 0x8, scoped, tag = 'scoped memory for tpu_custom_call.1']
    %12 = vsyncpa [#allocation4], 0
    %s13 = scalar_lea.sflag [#allocation4], 1
    %14 = vsyncpa %s13, 0
    loop: start=0, step=1, limit=4
    $region2: #{tpu_custom_call.1} parent=1 // loop_pre_header
      _
    $region3: #{tpu_custom_call.1} parent=1 // loop_header
      %s16 = sphi 0, %s20
      %p17 = scmp.ge.s32.totalorder %s16, 4
      %s26 = sphi 0, %s28
      %s29 = sphi 0, %s26
      %s30 = sphi 0, %s29
      %s46 = sphi 0, %s30
      %s50 = sphi 0, %s50
      %s52 = sphi 0, %s50
      %s53 = sphi 0, %s52
      %s67 = sphi 0, %s53
      %s71 = sphi 0, %s71
      %s73 = sphi 0, %s71
      %s74 = sphi 0, %s73
      %s88 = sphi 0, %s74
      %s92 = sphi 0, %s92
      %s94 = sphi 0, %s92
      %s95 = sphi 0, %s94
      %s109 = sphi 0, %s95
      %s113 = sphi 0, %s113
      %s115 = sphi 0, %s113
      %s116 = sphi 0, %s115
      %s130 = sphi 0, %s116
      %s134 = sphi 0, %s134
      %s136 = sphi 0, %s134
      %s137 = sphi 0, %s136
      %s151 = sphi 0, %s137
      %s155 = sphi 0, %s155
      %s157 = sphi 0, %s155
      %s158 = sphi 0, %s157
      %s172 = sphi 0, %s158
      %s178 = sphi 0, %s180
      %s181 = sphi 0, %s178
      %s182 = sphi 0, %s181
      %s198 = sphi 0, %s182
    $region4: #{tpu_custom_call.1} parent=1 // loop_header_branch
      %19 = sbr.rel (%p17) target = $region8
    $region5: #{tpu_custom_call.1} parent=1 // loop_body
      %s21 = ssub.s32 %s16, 1
      %s22 = ssub.s32 %s16, 2
      %s23 = sadd.s32 %s16, 1
      %s24 = ssub.s32 %s16, %s23
      %p25 = scmp.eq.s32.totalorder %s24, 0
      %s27 = sadd.s32 %s26, 1
      %s28 = scalar_select %p25, %s26, %s27
      %p31 = pneg %p25
      %p32 = scmp.eq.s32.totalorder %s16, 1
      %p33 = por %p31, %p32
      %p34 = scmp.ne.s32.totalorder %s26, %s29
      %p35 = scmp.eq.s32.totalorder %s16, 0
      %p36 = por %p34, %p35
      %p37 = scmp.ne.s32.totalorder %s26, %s29
      %p38 = scmp.eq.s32.totalorder %s21, 1
      %p39 = por %p37, %p38
      %p40 = scmp.ne.s32.totalorder %s29, %s30
      %p41 = scmp.eq.s32.totalorder %s21, 0
      %p42 = por %p40, %p41
      %p43 = scmp.ne.s32.totalorder %s29, %s30
      %p44 = scmp.eq.s32.totalorder %s22, 1
      %p45 = por %p43, %p44
      %p47 = scmp.ne.s32.totalorder %s30, %s46
      %p48 = scmp.eq.s32.totalorder %s22, 0
      %p49 = por %p47, %p48
      %s51 = sadd.s32 %s50, 1
      %p54 = scmp.eq.s32.totalorder %s16, 1
      %p55 = scmp.ne.s32.totalorder %s50, %s52
      %p56 = scmp.eq.s32.totalorder %s16, 0
      %p57 = por %p55, %p56
      %p58 = scmp.ne.s32.totalorder %s50, %s52
      %p59 = scmp.eq.s32.totalorder %s21, 1
      %p60 = por %p58, %p59
      %p61 = scmp.ne.s32.totalorder %s52, %s53
      %p62 = scmp.eq.s32.totalorder %s21, 0
      %p63 = por %p61, %p62
      %p64 = scmp.ne.s32.totalorder %s52, %s53
      %p65 = scmp.eq.s32.totalorder %s22, 1
      %p66 = por %p64, %p65
      %p68 = scmp.ne.s32.totalorder %s53, %s67
      %p69 = scmp.eq.s32.totalorder %s22, 0
      %p70 = por %p68, %p69
      %s72 = sadd.s32 %s71, 1
      %p75 = scmp.eq.s32.totalorder %s16, 1
      %p76 = scmp.ne.s32.totalorder %s71, %s73
      %p77 = scmp.eq.s32.totalorder %s16, 0
      %p78 = por %p76, %p77
      %p79 = scmp.ne.s32.totalorder %s71, %s73
      %p80 = scmp.eq.s32.totalorder %s21, 1
      %p81 = por %p79, %p80
      %p82 = scmp.ne.s32.totalorder %s73, %s74
      %p83 = scmp.eq.s32.totalorder %s21, 0
      %p84 = por %p82, %p83
      %p85 = scmp.ne.s32.totalorder %s73, %s74
      %p86 = scmp.eq.s32.totalorder %s22, 1
      %p87 = por %p85, %p86
      %p89 = scmp.ne.s32.totalorder %s74, %s88
      %p90 = scmp.eq.s32.totalorder %s22, 0
      %p91 = por %p89, %p90
      %s93 = sadd.s32 %s92, 1
      %p96 = scmp.eq.s32.totalorder %s16, 1
      %p97 = scmp.ne.s32.totalorder %s92, %s94
      %p98 = scmp.eq.s32.totalorder %s16, 0
      %p99 = por %p97, %p98
      %p100 = scmp.ne.s32.totalorder %s92, %s94
      %p101 = scmp.eq.s32.totalorder %s21, 1
      %p102 = por %p100, %p101
      %p103 = scmp.ne.s32.totalorder %s94, %s95
      %p104 = scmp.eq.s32.totalorder %s21, 0
      %p105 = por %p103, %p104
      %p106 = scmp.ne.s32.totalorder %s94, %s95
      %p107 = scmp.eq.s32.totalorder %s22, 1
      %p108 = por %p106, %p107
      %p110 = scmp.ne.s32.totalorder %s95, %s109
      %p111 = scmp.eq.s32.totalorder %s22, 0
      %p112 = por %p110, %p111
      %s114 = sadd.s32 %s113, 1
      %p117 = scmp.eq.s32.totalorder %s16, 1
      %p118 = scmp.ne.s32.totalorder %s113, %s115
      %p119 = scmp.eq.s32.totalorder %s16, 0
      %p120 = por %p118, %p119
      %p121 = scmp.ne.s32.totalorder %s113, %s115
      %p122 = scmp.eq.s32.totalorder %s21, 1
      %p123 = por %p121, %p122
      %p124 = scmp.ne.s32.totalorder %s115, %s116
      %p125 = scmp.eq.s32.totalorder %s21, 0
      %p126 = por %p124, %p125
      %p127 = scmp.ne.s32.totalorder %s115, %s116
      %p128 = scmp.eq.s32.totalorder %s22, 1
      %p129 = por %p127, %p128
      %p131 = scmp.ne.s32.totalorder %s116, %s130
      %p132 = scmp.eq.s32.totalorder %s22, 0
      %p133 = por %p131, %p132
      %s135 = sadd.s32 %s134, 1
      %p138 = scmp.eq.s32.totalorder %s16, 1
      %p139 = scmp.ne.s32.totalorder %s134, %s136
      %p140 = scmp.eq.s32.totalorder %s16, 0
      %p141 = por %p139, %p140
      %p142 = scmp.ne.s32.totalorder %s134, %s136
      %p143 = scmp.eq.s32.totalorder %s21, 1
      %p144 = por %p142, %p143
      %p145 = scmp.ne.s32.totalorder %s136, %s137
      %p146 = scmp.eq.s32.totalorder %s21, 0
      %p147 = por %p145, %p146
      %p148 = scmp.ne.s32.totalorder %s136, %s137
      %p149 = scmp.eq.s32.totalorder %s22, 1
      %p150 = por %p148, %p149
      %p152 = scmp.ne.s32.totalorder %s137, %s151
      %p153 = scmp.eq.s32.totalorder %s22, 0
      %p154 = por %p152, %p153
      %s156 = sadd.s32 %s155, 1
      %p159 = scmp.eq.s32.totalorder %s16, 1
      %p160 = scmp.ne.s32.totalorder %s155, %s157
      %p161 = scmp.eq.s32.totalorder %s16, 0
      %p162 = por %p160, %p161
      %p163 = scmp.ne.s32.totalorder %s155, %s157
      %p164 = scmp.eq.s32.totalorder %s21, 1
      %p165 = por %p163, %p164
      %p166 = scmp.ne.s32.totalorder %s157, %s158
      %p167 = scmp.eq.s32.totalorder %s21, 0
      %p168 = por %p166, %p167
      %p169 = scmp.ne.s32.totalorder %s157, %s158
      %p170 = scmp.eq.s32.totalorder %s22, 1
      %p171 = por %p169, %p170
      %p173 = scmp.ne.s32.totalorder %s158, %s172
      %p174 = scmp.eq.s32.totalorder %s22, 0
      %p175 = por %p173, %p174
      %s176 = ssub.s32 %s16, %s23
      %p177 = scmp.eq.s32.totalorder %s176, 0
      %s179 = sadd.s32 %s178, 1
      %s180 = scalar_select %p177, %s178, %s179
      %p183 = pneg %p177
      %p184 = scmp.eq.s32.totalorder %s16, 1
      %p185 = por %p183, %p184
      %p186 = scmp.ne.s32.totalorder %s178, %s181
      %p187 = scmp.eq.s32.totalorder %s16, 0
      %p188 = por %p186, %p187
      %p189 = scmp.ne.s32.totalorder %s178, %s181
      %p190 = scmp.eq.s32.totalorder %s21, 1
      %p191 = por %p189, %p190
      %p192 = scmp.ne.s32.totalorder %s181, %s182
      %p193 = scmp.eq.s32.totalorder %s21, 0
      %p194 = por %p192, %p193
      %p195 = scmp.ne.s32.totalorder %s181, %s182
      %p196 = scmp.eq.s32.totalorder %s22, 1
      %p197 = por %p195, %p196
      %p199 = scmp.ne.s32.totalorder %s182, %s198
      %p200 = scmp.eq.s32.totalorder %s22, 0
      %p201 = por %p199, %p200
      %p202 = scmp.le.s32.totalorder 1, %s16
      %p203 = scmp.lt.s32.totalorder %s16, 3
      %p204 = pnand %p202, %p203
      %p205 = pneg %p204
      // Predicated region
      $region9: #{tpu_custom_call.1} parent=5 // pred_check
        _
      $region10: #{tpu_custom_call.1} parent=5 // pred_check_branch
        %207 = sbr.rel (%p204) target = $region12
      $region11: #{tpu_custom_call.1} parent=5 // pred_region
        %s208 = ssub.s32 %s16, 1
        // Predicated region
        $region13: #{tpu_custom_call.1} parent=11 // pred_check
          %p209 = pneg %p63
        $region14: #{tpu_custom_call.1} parent=11 // pred_check_branch
          %211 = sbr.rel (%p209) target = $region16
        $region15: #{tpu_custom_call.1} parent=11 // pred_region
          _
        $region16: #{tpu_custom_call.1} parent=11 // pred_fallthru
          _
        // Predicated region
        $region17: #{tpu_custom_call.1} parent=11 // pred_check
          %p212 = pneg %p84
        $region18: #{tpu_custom_call.1} parent=11 // pred_check_branch
          %214 = sbr.rel (%p212) target = $region20
        $region19: #{tpu_custom_call.1} parent=11 // pred_region
          _
        $region20: #{tpu_custom_call.1} parent=11 // pred_fallthru
          _
        // Predicated region
        $region21: #{tpu_custom_call.1} parent=11 // pred_check
          %p215 = pneg %p105
        $region22: #{tpu_custom_call.1} parent=11 // pred_check_branch
          %217 = sbr.rel (%p215) target = $region24
        $region23: #{tpu_custom_call.1} parent=11 // pred_region
          _
        $region24: #{tpu_custom_call.1} parent=11 // pred_fallthru
          _
        // Predicated region
        $region25: #{tpu_custom_call.1} parent=11 // pred_check
          %p218 = pneg %p126
        $region26: #{tpu_custom_call.1} parent=11 // pred_check_branch
          %220 = sbr.rel (%p218) target = $region28
        $region27: #{tpu_custom_call.1} parent=11 // pred_region
          _
        $region28: #{tpu_custom_call.1} parent=11 // pred_fallthru
          _
        // Predicated region
        $region29: #{tpu_custom_call.1} parent=11 // pred_check
          %p221 = pneg %p147
        $region30: #{tpu_custom_call.1} parent=11 // pred_check_branch
          %223 = sbr.rel (%p221) target = $region32
        $region31: #{tpu_custom_call.1} parent=11 // pred_region
          _
        $region32: #{tpu_custom_call.1} parent=11 // pred_fallthru
          _
        // Predicated region
        $region33: #{tpu_custom_call.1} parent=11 // pred_check
          %p224 = pneg %p168
        $region34: #{tpu_custom_call.1} parent=11 // pred_check_branch
          %226 = sbr.rel (%p224) target = $region36
        $region35: #{tpu_custom_call.1} parent=11 // pred_region
          _
        $region36: #{tpu_custom_call.1} parent=11 // pred_fallthru
          _
      $region12: #{tpu_custom_call.1} parent=5 // pred_fallthru
        _
      %p227 = scmp.lt.s32.totalorder %s16, 2
      // Predicated region
      $region37: #{tpu_custom_call.1} parent=5 // pred_check
        %p228 = pneg %p227
      $region38: #{tpu_custom_call.1} parent=5 // pred_check_branch
        %230 = sbr.rel (%p228) target = $region40
      $region39: #{tpu_custom_call.1} parent=5 // pred_region
        // Predicated region
        $region41: #{tpu_custom_call.1} parent=39 // pred_check
          %p231 = pneg %p36
        $region42: #{tpu_custom_call.1} parent=39 // pred_check_branch
          %233 = sbr.rel (%p231) target = $region44
        $region43: #{tpu_custom_call.1} parent=39 // pred_region
          %p234 = scmp.lt.s32.totalorder %s16, 1
          %s235 = scalar_select %p234, %s16, 1
          %s236 = smul.addr %s235, 2
          %s237 = smul.addr %s236, 4
          %s238 = scalar_lea.vmem %s0, %s237
        $region44: #{tpu_custom_call.1} parent=39 // pred_fallthru
          _
      $region40: #{tpu_custom_call.1} parent=5 // pred_fallthru
        _
      %p239 = scmp.le.s32.totalorder 1, %s16
      %p240 = scmp.lt.s32.totalorder %s16, 3
      %p241 = pnand %p239, %p240
      %p242 = pneg %p241
      // Predicated region
      $region45: #{tpu_custom_call.1} parent=5 // pred_check
        _
      $region46: #{tpu_custom_call.1} parent=5 // pred_check_branch
        %244 = sbr.rel (%p241) target = $region48
      $region47: #{tpu_custom_call.1} parent=5 // pred_region
        %s245 = ssub.s32 %s16, 1
        %p246 = scmp.lt.s32.totalorder %s21, 1
        %s247 = scalar_select %p246, %s21, 1
        %s248 = smul.addr %s247, 2
        %s249 = smul.addr %s248, 4
        %s250 = scalar_lea.vmem %s0, %s249
        %p251 = pneg %p42
        %p252 = pneg %p39
        %p253 = pneg %p63
        %p254 = pneg %p60
        %p255 = pneg %p84
        %p256 = pneg %p81
        %p257 = pneg %p105
        %p258 = pneg %p102
        %p259 = pneg %p126
        %p260 = pneg %p123
        %p261 = pneg %p147
        %p262 = pneg %p144
        %p263 = pneg %p168
        %p264 = pneg %p165
        %p265 = pneg %p194
        %p266 = pneg %p191
        %s267 = sand.u32 %s181, 1
        %s268 = scalar_lea.sflag [#allocation4], %s267
        %s269 = sand.u32 %s181, 1
        %s270 = smul.addr %s269, 64
        %s271 = scalar_lea.vmem [#allocation3], %s270
        %p272 = scmp.lt.s32.totalorder %s21, 1
        %s273 = scalar_select %p272, %s21, 1
        %s274 = smul.addr %s273, 2
        %s275 = smul.addr %s274, 4
        %s276 = scalar_lea.vmem %s0, %s275
        %vm277 = vcmask 130048
        %278 = vst.msk [vmem:[#allocation2] sm:$0xff] %vm277, 0.0
        %vm279 = vcmask 261248
        %280 = vst.msk [vmem:[#allocation2 + $0x10] sm:$0xff] %vm279, 0.0
        %v281 = vlaneseq
        %v282 = vand.u32 %v281, 127
        %v283 = vadd.s32 %v282, 128
        %vm284 = vcmp.lt.s32.totalorder %v282, 0
        %v285 = vsub.s32 0, %v282
        %v286 = vsel %vm284, %v285, %v282
        %v287 = vshrl.u32 %v286, 4
        %v288 = vand.u32 %v286, 15
        %v289 = vsub.s32 0, %v288
        %v290 = vsel %vm284, %v289, %v288
        %vm291 = vcmp.lt.s32.totalorder %v283, 0
        %v292 = vsub.s32 0, %v283
        %v293 = vsel %vm291, %v292, %v283
        %v294 = vshrl.u32 %v293, 4
        %v295 = vand.u32 %v293, 15
        %v296 = vsub.s32 0, %v295
        %v297 = vsel %vm291, %v296, %v295
        %vm298 = vcmp.ne.s32.totalorder %v290, 0
        %vm299 = vcmp.ne.s32.totalorder %v297, 0
        %vm300 = vcmp.lt.s32.totalorder %v290, 0
        %vm301 = vcmp.lt.s32.totalorder %v297, 0
        %vm302 = vmand %vm300, %vm298
        %vm303 = vmand %vm301, %vm299
        %v304 = vadd.s32 %v290, 16
        %v305 = vadd.s32 %v297, 16
        %v306 = vsel %vm302, %v304, %v290
        %v307 = vsel %vm303, %v305, %v297
        %vm308 = vcmp.ge.s32.totalorder %v306, 1
        %vm309 = vcmp.ge.s32.totalorder %v307, 1
        %vm310 = vcmp.le.s32.totalorder %v306, 14
        %vm311 = vcmp.le.s32.totalorder %v307, 14
        %v312 = vld [vmem:[%s276] sm:$0xff]
        %v313 = vld [vmem:[%s1] sm:$0xff]
        %v314 = vld [vmem:[%s2] sm:$0xff]
        %316 = vset.pattern.permute.xlu0 0
        %317 = vperm.xlu0 %316, %v314
        %v318 = vpop.permute.xlu0 %317
        %v321 = vcombine.high %v312, %v312
        %vm322 = vcmask 31744
        %v324 = vsel %vm322, %v313, 0
        %vm326 = vcmask 1043456
        %v327 = vsel %vm326, %v312, 0
        %v329 = vsel %vm326, %v321, 0
        %331 = vmatprep.subr.mxu0 0.0
        %332 = vmatpush1.msra.mxu0 0.0
        %333 = vmatprep.subr.mxu0 0.0
        %334 = vmatpush1.msra.mxu0 0.0
        %335 = vmatprep.subr.mxu0 0.0
        %336 = vmatpush1.msra.mxu0 0.0
        %337 = vmatprep.subr.mxu0 0.0
        %338 = vmatpush1.msra.mxu0 0.0
        %339 = vmatprep.subr.mxu0 0.0
        %340 = vmatpush1.msra.mxu0 0.0
        %341 = vmatprep.subr.mxu0 0.0
        %342 = vmatpush1.msra.mxu0 0.0
        %343 = vmatprep.subr.mxu0 0.0
        %344 = vmatpush1.msra.mxu0 0.0
        %345 = vmatprep.subr.mxu0 0.0
        %346 = vmatpush1.msra.mxu0 0.0
        %347 = vmatprep.subr.mxu0 0.0
        %348 = vmatpush1.msra.mxu0 0.0
        %349 = vmatprep.subr.mxu0 0.0
        %350 = vmatpush1.msra.mxu0 0.0
        %351 = vmatprep.subr.mxu0 0.0
        %352 = vmatpush1.msra.mxu0 0.0
        %353 = vmatprep.subr.mxu0 0.0
        %354 = vmatpush1.msra.mxu0 0.0
        %355 = vmatprep.subr.mxu0 0.0
        %356 = vmatpush1.msra.mxu0 0.0
        %357 = vmatprep.subr.mxu0 0.0
        %358 = vmatpush1.msra.mxu0 0.0
        %359 = vmatprep.subr.mxu0 0.0
        %360 = vmatpush1.msra.mxu0 0.0
        %361 = vmatprep.subr.mxu0 %v329
        %362 = vmatpush1.msra.mxu0 %v327
        %363 = vmatprep.subr.mxu0 0.0
        %364 = vmatpush2.msra.mxu0 0.0
        %365 = vmatprep.subr.mxu0 0.0
        %366 = vmatpush2.msra.mxu0 0.0
        %367 = vmatprep.subr.mxu0 0.0
        %368 = vmatpush2.msra.mxu0 0.0
        %369 = vmatprep.subr.mxu0 0.0
        %370 = vmatpush2.msra.mxu0 0.0
        %371 = vmatprep.subr.mxu0 0.0
        %372 = vmatpush2.msra.mxu0 0.0
        %373 = vmatprep.subr.mxu0 0.0
        %374 = vmatpush2.msra.mxu0 0.0
        %375 = vmatprep.subr.mxu0 0.0
        %376 = vmatpush2.msra.mxu0 0.0
        %377 = vmatprep.subr.mxu0 0.0
        %378 = vmatpush2.msra.mxu0 0.0
        %379 = vmatprep.subr.mxu0 0.0
        %380 = vmatpush2.msra.mxu0 0.0
        %381 = vmatprep.subr.mxu0 0.0
        %382 = vmatpush2.msra.mxu0 0.0
        %383 = vmatprep.subr.mxu0 0.0
        %384 = vmatpush2.msra.mxu0 0.0
        %385 = vmatprep.subr.mxu0 0.0
        %386 = vmatpush2.msra.mxu0 0.0
        %387 = vmatprep.subr.mxu0 0.0
        %388 = vmatpush2.msra.mxu0 0.0
        %389 = vmatprep.subr.mxu0 0.0
        %390 = vmatpush2.msra.mxu0 0.0
        %391 = vmatprep.subr.mxu0 0.0
        %392 = vmatpush2.msra.mxu0 0.0
        %393 = vmatprep.subr.mxu0 0.0
        %394 = vmatpush2.msra.mxu0 0.0
        %395 = vmatprep.mubr.f32.mxu0 0.0
        %396 = vmatmul.mubr.f32.gmra.mxu0 %v324
        %v397 = vpop.f32.mrf.mxu0
        %v398 = vadd.f32 %v318, %v397
        %v399 = vpop.f32.mrf.mxu0
        %v400 = vadd.f32 %v318, %v399
        %401 = vdwg.mxu0
        %v402 = vmax.f32 %v398, 0.0
        %v403 = vmax.f32 %v400, 0.0
        %v404 = vld [vmem:[%s3] sm:$0xff]
        %v405 = vld [vmem:[%s3 + $0x8] sm:$0xff]
        %v406 = vld [vmem:[%s4] sm:$0xff]
        %v407 = vld [vmem:[%s4 + $0x8] sm:$0xff]
        %409 = vset.pattern.permute.xlu0 0
        %410 = vperm.xlu0 %409, %v406
        %v411 = vpop.permute.xlu0 %410
        %414 = vset.pattern.permute.xlu0 0
        %415 = vperm.xlu0 %414, %v407
        %v416 = vpop.permute.xlu0 %415
        %vm418 = vcmask 64512
        %v420 = vsel %vm418, %v404, 0
        %v423 = vsel %vm418, %v405, 0
        %425 = vmatprep.subr.mxu0 0.0
        %426 = vmatpush1.msra.mxu0 0.0
        %427 = vmatprep.subr.mxu0 0.0
        %428 = vmatpush1.msra.mxu0 0.0
        %429 = vmatprep.subr.mxu0 0.0
        %430 = vmatpush1.msra.mxu0 0.0
        %431 = vmatprep.subr.mxu0 0.0
        %432 = vmatpush1.msra.mxu0 0.0
        %433 = vmatprep.subr.mxu0 0.0
        %434 = vmatpush1.msra.mxu0 0.0
        %435 = vmatprep.subr.mxu0 0.0
        %436 = vmatpush1.msra.mxu0 0.0
        %437 = vmatprep.subr.mxu0 0.0
        %438 = vmatpush1.msra.mxu0 0.0
        %439 = vmatprep.subr.mxu0 0.0
        %440 = vmatpush1.msra.mxu0 0.0
        %441 = vmatprep.subr.mxu0 0.0
        %442 = vmatpush1.msra.mxu0 0.0
        %443 = vmatprep.subr.mxu0 0.0
        %444 = vmatpush1.msra.mxu0 0.0
        %445 = vmatprep.subr.mxu0 0.0
        %446 = vmatpush1.msra.mxu0 0.0
        %447 = vmatprep.subr.mxu0 0.0
        %448 = vmatpush1.msra.mxu0 0.0
        %449 = vmatprep.subr.mxu0 0.0
        %450 = vmatpush1.msra.mxu0 0.0
        %451 = vmatprep.subr.mxu0 0.0
        %452 = vmatpush1.msra.mxu0 0.0
        %453 = vmatprep.subr.mxu0 0.0
        %454 = vmatpush1.msra.mxu0 0.0
        %455 = vmatprep.subr.mxu0 %v403
        %456 = vmatpush1.msra.mxu0 %v402
        %457 = vmatprep.subr.mxu0 0.0
        %458 = vmatpush2.msra.mxu0 0.0
        %459 = vmatprep.subr.mxu0 0.0
        %460 = vmatpush2.msra.mxu0 0.0
        %461 = vmatprep.subr.mxu0 0.0
        %462 = vmatpush2.msra.mxu0 0.0
        %463 = vmatprep.subr.mxu0 0.0
        %464 = vmatpush2.msra.mxu0 0.0
        %465 = vmatprep.subr.mxu0 0.0
        %466 = vmatpush2.msra.mxu0 0.0
        %467 = vmatprep.subr.mxu0 0.0
        %468 = vmatpush2.msra.mxu0 0.0
        %469 = vmatprep.subr.mxu0 0.0
        %470 = vmatpush2.msra.mxu0 0.0
        %471 = vmatprep.subr.mxu0 0.0
        %472 = vmatpush2.msra.mxu0 0.0
        %473 = vmatprep.subr.mxu0 0.0
        %474 = vmatpush2.msra.mxu0 0.0
        %475 = vmatprep.subr.mxu0 0.0
        %476 = vmatpush2.msra.mxu0 0.0
        %477 = vmatprep.subr.mxu0 0.0
        %478 = vmatpush2.msra.mxu0 0.0
        %479 = vmatprep.subr.mxu0 0.0
        %480 = vmatpush2.msra.mxu0 0.0
        %481 = vmatprep.subr.mxu0 0.0
        %482 = vmatpush2.msra.mxu0 0.0
        %483 = vmatprep.subr.mxu0 0.0
        %484 = vmatpush2.msra.mxu0 0.0
        %485 = vmatprep.subr.mxu0 0.0
        %486 = vmatpush2.msra.mxu0 0.0
        %487 = vmatprep.subr.mxu0 0.0
        %488 = vmatpush2.msra.mxu0 0.0
        %489 = vmatprep.mubr.f32.mxu0 0.0
        %490 = vmatmul.mubr.f32.gmra.mxu0 %v420
        %v491 = vpop.f32.mrf.mxu0
        %v492 = vadd.f32 %v411, %v491
        %v493 = vpop.f32.mrf.mxu0
        %v494 = vadd.f32 %v411, %v493
        %495 = vmatprep.mubr.f32.mxu0 0.0
        %496 = vmatmul.mubr.f32.gmra.mxu0 %v423
        %v497 = vpop.f32.mrf.mxu0
        %v498 = vadd.f32 %v416, %v497
        %v499 = vpop.f32.mrf.mxu0
        %v500 = vadd.f32 %v416, %v499
        %501 = vdwg.mxu0
        %v502 = vmax.f32 %v492, 0.0
        %v503 = vmax.f32 %v494, 0.0
        %v504 = vmax.f32 %v498, 0.0
        %v505 = vmax.f32 %v500, 0.0
        %506 = vst [vmem:[%s271] sm:$0xff] %v502
        %507 = vst [vmem:[%s271 + $0x8] sm:$0xff] %v503
        %508 = vst [vmem:[%s271 + $0x10] sm:$0xff] %v504
        %509 = vst [vmem:[%s271 + $0x18] sm:$0xff] %v505
        %512 = vrot.lane.b32.xlu0 %v402, 16
        %v513 = vpop.permute.xlu0 %512
        %514 = vrot.lane.b32.xlu0 %v403, 16
        %v515 = vpop.permute.xlu0 %514
        %v516 = vsel %vm277, %v513, %v515
        %vm520 = vcmask 1047680
        %521 = vst.msk [vmem:[#allocation2] sm:$0xff] %vm520, %v513
        %522 = vst [vmem:[#allocation2 + $0x8] sm:$0xff] %v516
        %523 = vst.msk [vmem:[#allocation2 + $0x10] sm:$0xff] %vm277, %v515
        %v524 = vld [vmem:[#allocation2] sm:$0xff]
        %v525 = vld [vmem:[#allocation2 + $0x8] sm:$0xff]
        %v526 = vld [vmem:[#allocation2 + $0x10] sm:$0xff]
        %528 = vrot.lane.b32.xlu0 %v526, 97
        %v529 = vpop.permute.xlu0 %528
        %533 = vrot.lane.b32.xlu0 %v524, 1
        %v534 = vpop.permute.xlu0 %533
        %535 = vrot.lane.b32.xlu0 %v525, 1
        %v536 = vpop.permute.xlu0 %535
        %vm537 = vcmask 7168
        %v538 = vsel %vm537, %v534, %v536
        %v541 = vsel %vm537, %v529, %v534
        %v542 = vsel %vm308, 1, 0
        %v543 = vsel %vm309, 1, 0
        %vm544 = vcmp.eq.s32.totalorder %v542, 1
        %vm545 = vcmp.eq.s32.totalorder %v543, 1
        %v546 = vsel %vm544, %v541, 0.0
        %v547 = vsel %vm545, %v538, 0.0
        %548 = vrot.lane.b32.xlu0 %v524, 127
        %v549 = vpop.permute.xlu0 %548
        %550 = vrot.lane.b32.xlu0 %v525, 127
        %v551 = vpop.permute.xlu0 %550
        %552 = vrot.lane.b32.xlu0 %v526, 127
        %v553 = vpop.permute.xlu0 %552
        %vm554 = vcmask 1039360
        %v555 = vsel %vm554, %v549, %v551
        %v556 = vsel %vm554, %v551, %v553
        %v559 = vsel %vm310, 1, 0
        %v560 = vsel %vm311, 1, 0
        %vm561 = vcmp.eq.s32.totalorder %v559, 1
        %vm562 = vcmp.eq.s32.totalorder %v560, 1
        %v563 = vsel %vm561, %v555, 0.0
        %v564 = vsel %vm562, %v556, 0.0
        %565 = vrot.lane.b32.xlu0 %v524, 113
        %v566 = vpop.permute.xlu0 %565
        %567 = vrot.lane.b32.xlu0 %v525, 113
        %v568 = vpop.permute.xlu0 %567
        %569 = vrot.lane.b32.xlu0 %v526, 113
        %v570 = vpop.permute.xlu0 %569
        %vm571 = vcmask 924672
        %v572 = vsel %vm571, %v566, %v568
        %v573 = vsel %vm571, %v568, %v570
        %v576 = vsel %vm544, %v572, 0.0
        %v577 = vsel %vm545, %v573, 0.0
        %578 = vrot.lane.b32.xlu0 %v524, 112
        %v579 = vpop.permute.xlu0 %578
        %580 = vrot.lane.b32.xlu0 %v525, 112
        %v581 = vpop.permute.xlu0 %580
        %582 = vrot.lane.b32.xlu0 %v526, 112
        %v583 = vpop.permute.xlu0 %582
        %vm584 = vcmask 916480
        %v585 = vsel %vm584, %v579, %v581
        %v586 = vsel %vm584, %v581, %v583
        %589 = vrot.lane.b32.xlu0 %v524, 111
        %v590 = vpop.permute.xlu0 %589
        %591 = vrot.lane.b32.xlu0 %v525, 111
        %v592 = vpop.permute.xlu0 %591
        %593 = vrot.lane.b32.xlu0 %v526, 111
        %v594 = vpop.permute.xlu0 %593
        %vm595 = vcmask 908288
        %v596 = vsel %vm595, %v590, %v592
        %v597 = vsel %vm595, %v592, %v594
        %v600 = vsel %vm561, %v596, 0.0
        %v601 = vsel %vm562, %v597, 0.0
        %602 = vrot.lane.b32.xlu0 %v524, 97
        %v603 = vpop.permute.xlu0 %602
        %604 = vrot.lane.b32.xlu0 %v525, 97
        %v605 = vpop.permute.xlu0 %604
        %vm606 = vcmask 793600
        %v607 = vsel %vm606, %v603, %v605
        %v608 = vsel %vm606, %v605, %v529
        %v611 = vsel %vm544, %v607, 0.0
        %v612 = vsel %vm545, %v608, 0.0
        %613 = vrot.lane.b32.xlu0 %v524, 96
        %v614 = vpop.permute.xlu0 %613
        %615 = vrot.lane.b32.xlu0 %v525, 96
        %v616 = vpop.permute.xlu0 %615
        %617 = vrot.lane.b32.xlu0 %v526, 96
        %v618 = vpop.permute.xlu0 %617
        %vm619 = vcmask 785408
        %v620 = vsel %vm619, %v614, %v616
        %v621 = vsel %vm619, %v616, %v618
        %624 = vrot.lane.b32.xlu0 %v524, 95
        %v625 = vpop.permute.xlu0 %624
        %626 = vrot.lane.b32.xlu0 %v525, 95
        %v627 = vpop.permute.xlu0 %626
        %628 = vrot.lane.b32.xlu0 %v526, 95
        %v629 = vpop.permute.xlu0 %628
        %vm630 = vcmask 777216
        %v631 = vsel %vm630, %v625, %v627
        %v632 = vsel %vm630, %v627, %v629
        %v636 = vsel %vm554, %v632, %v549
        %v637 = vsel %vm561, %v631, 0.0
        %v638 = vsel %vm562, %v636, 0.0
        %v639 = vld [vmem:[%s5] sm:$0xff]
        %v640 = vld [vmem:[%s5 + $0x8] sm:$0xff]
        %v641 = vld [vmem:[%s6] sm:$0xff]
        %v642 = vld [vmem:[%s6 + $0x8] sm:$0xff]
        %644 = vset.pattern.permute.xlu0 0
        %645 = vperm.xlu0 %644, %v641
        %v646 = vpop.permute.xlu0 %645
        %649 = vset.pattern.permute.xlu0 0
        %650 = vperm.xlu0 %649, %v642
        %v651 = vpop.permute.xlu0 %650
        %vm653 = vcmask 588800
        %v655 = vsel %vm653, %v639, 0
        %v658 = vsel %vm653, %v640, 0
        %660 = vmatprep.subr.mxu0 0.0
        %661 = vmatpush1.msra.mxu0 0.0
        %662 = vmatprep.subr.mxu0 0.0
        %663 = vmatpush1.msra.mxu0 0.0
        %664 = vmatprep.subr.mxu0 0.0
        %665 = vmatpush1.msra.mxu0 0.0
        %666 = vmatprep.subr.mxu0 0.0
        %667 = vmatpush1.msra.mxu0 0.0
        %668 = vmatprep.subr.mxu0 0.0
        %669 = vmatpush1.msra.mxu0 0.0
        %670 = vmatprep.subr.mxu0 0.0
        %671 = vmatpush1.msra.mxu0 0.0
        %672 = vmatprep.subr.mxu0 0.0
        %673 = vmatpush1.msra.mxu0 0.0
        %674 = vmatprep.subr.mxu0 %v638
        %675 = vmatpush1.msra.mxu0 %v637
        %676 = vmatprep.subr.mxu0 %v621
        %677 = vmatpush1.msra.mxu0 %v620
        %678 = vmatprep.subr.mxu0 %v612
        %679 = vmatpush1.msra.mxu0 %v611
        %680 = vmatprep.subr.mxu0 %v601
        %681 = vmatpush1.msra.mxu0 %v600
        %682 = vmatprep.subr.mxu0 %v586
        %683 = vmatpush1.msra.mxu0 %v585
        %684 = vmatprep.subr.mxu0 %v577
        %685 = vmatpush1.msra.mxu0 %v576
        %686 = vmatprep.subr.mxu0 %v564
        %687 = vmatpush1.msra.mxu0 %v563
        %688 = vmatprep.subr.mxu0 %v525
        %689 = vmatpush1.msra.mxu0 %v524
        %690 = vmatprep.subr.mxu0 %v547
        %691 = vmatpush1.msra.mxu0 %v546
        %692 = vmatprep.subr.mxu0 0.0
        %693 = vmatpush2.msra.mxu0 0.0
        %694 = vmatprep.subr.mxu0 0.0
        %695 = vmatpush2.msra.mxu0 0.0
        %696 = vmatprep.subr.mxu0 0.0
        %697 = vmatpush2.msra.mxu0 0.0
        %698 = vmatprep.subr.mxu0 0.0
        %699 = vmatpush2.msra.mxu0 0.0
        %700 = vmatprep.subr.mxu0 0.0
        %701 = vmatpush2.msra.mxu0 0.0
        %702 = vmatprep.subr.mxu0 0.0
        %703 = vmatpush2.msra.mxu0 0.0
        %704 = vmatprep.subr.mxu0 0.0
        %705 = vmatpush2.msra.mxu0 0.0
        %706 = vmatprep.subr.mxu0 0.0
        %707 = vmatpush2.msra.mxu0 0.0
        %708 = vmatprep.subr.mxu0 0.0
        %709 = vmatpush2.msra.mxu0 0.0
        %710 = vmatprep.subr.mxu0 0.0
        %711 = vmatpush2.msra.mxu0 0.0
        %712 = vmatprep.subr.mxu0 0.0
        %713 = vmatpush2.msra.mxu0 0.0
        %714 = vmatprep.subr.mxu0 0.0
        %715 = vmatpush2.msra.mxu0 0.0
        %716 = vmatprep.subr.mxu0 0.0
        %717 = vmatpush2.msra.mxu0 0.0
        %718 = vmatprep.subr.mxu0 0.0
        %719 = vmatpush2.msra.mxu0 0.0
        %720 = vmatprep.subr.mxu0 0.0
        %721 = vmatpush2.msra.mxu0 0.0
        %722 = vmatprep.subr.mxu0 0.0
        %723 = vmatpush2.msra.mxu0 0.0
        %724 = vmatprep.mubr.f32.mxu0 0.0
        %725 = vmatmul.mubr.f32.gmra.mxu0 %v655
        %v726 = vpop.f32.mrf.mxu0
        %v727 = vadd.f32 %v646, %v726
        %v728 = vpop.f32.mrf.mxu0
        %v729 = vadd.f32 %v646, %v728
        %730 = vmatprep.mubr.f32.mxu0 0.0
        %731 = vmatmul.mubr.f32.gmra.mxu0 %v658
        %v732 = vpop.f32.mrf.mxu0
        %v733 = vadd.f32 %v651, %v732
        %v734 = vpop.f32.mrf.mxu0
        %v735 = vadd.f32 %v651, %v734
        %736 = vdwg.mxu0
        %v737 = vmax.f32 %v727, 0.0
        %v738 = vmax.f32 %v729, 0.0
        %v739 = vmax.f32 %v733, 0.0
        %v740 = vmax.f32 %v735, 0.0
        %741 = vst [vmem:[%s271 + $0x20] sm:$0xff] %v737
        %742 = vst [vmem:[%s271 + $0x28] sm:$0xff] %v738
        %743 = vst [vmem:[%s271 + $0x30] sm:$0xff] %v739
        %744 = vst [vmem:[%s271 + $0x38] sm:$0xff] %v740
        %s745 = sand.u32 %s181, 1
        %s746 = scalar_lea.sflag [#allocation4], %s745
        %s747 = sand.u32 %s181, 1
        %s748 = smul.addr %s747, 64
        %s749 = scalar_lea.vmem [#allocation3], %s748
        // Predicated region
        $region49: #{tpu_custom_call.1} parent=47 // pred_check
          %p750 = pneg %p191
        $region50: #{tpu_custom_call.1} parent=47 // pred_check_branch
          %752 = sbr.rel (%p750) target = $region52
        $region51: #{tpu_custom_call.1} parent=47 // pred_region
          %s754 = ssub.s32 1024, 1024
          %755 = vsyncadd %s746, %s754
          %s756 = smul.addr %s21, 8
          %s757 = smul.addr %s756, 128
          %s758 = scalar_lea.hbm %s7, %s757
          %s759 = sshll.u32 %s749, 4
          %s760 = int_to_ptr.vmem [resolvable:$true] %s759
          %765 = dma.vmem_to_hbm [thread:$0]  %s760, 1024, %s758, %s746, 256, 256, 16
        $region52: #{tpu_custom_call.1} parent=47 // pred_fallthru
          _
      $region48: #{tpu_custom_call.1} parent=5 // pred_fallthru
        _
      %p766 = scmp.le.s32.totalorder 2, %s16
      // Predicated region
      $region53: #{tpu_custom_call.1} parent=5 // pred_check
        %p767 = pneg %p766
      $region54: #{tpu_custom_call.1} parent=5 // pred_check_branch
        %769 = sbr.rel (%p767) target = $region56
      $region55: #{tpu_custom_call.1} parent=5 // pred_region
        %s770 = ssub.s32 %s16, 2
        // Predicated region
        $region57: #{tpu_custom_call.1} parent=55 // pred_check
          %p771 = pneg %p197
        $region58: #{tpu_custom_call.1} parent=55 // pred_check_branch
          %773 = sbr.rel (%p771) target = $region60
        $region59: #{tpu_custom_call.1} parent=55 // pred_region
          %s774 = sand.u32 %s182, 1
          %s775 = scalar_lea.sflag [#allocation4], %s774
          %s776 = sand.u32 %s182, 1
          %s777 = smul.addr %s776, 64
          %s778 = scalar_lea.vmem [#allocation3], %s777
          %779 = dma.done %s775, 1024
        $region60: #{tpu_custom_call.1} parent=55 // pred_fallthru
          _
      $region56: #{tpu_custom_call.1} parent=5 // pred_fallthru
        _
    $region6: #{tpu_custom_call.1} parent=1 // loop_footer
      %s20 = sadd.s32 1, %s16
    $region7: #{tpu_custom_call.1} parent=1 // loop_footer_branch
      %15 = sbr.rel target = $region3
    $region8: #{tpu_custom_call.1} parent=1 // loop_exit
      _
    %780 = vsyncpa [#allocation4], 1
    %s781 = scalar_lea.sflag [#allocation4], 1
    %782 = vsyncpa %s781, 1

</llo_original>
